<compile_context>
chip_gen: v7x
topology: tpu7x:2x2x1
jax: 0.10.0
libtpu: 0.0.40
codegen_flags: <defaults>
</compile_context>

<pallas_src>
import functools
import math

import jax
import jax.numpy as jnp
from jax import lax
from jax.experimental import pallas as pl
from jax.experimental.pallas import tpu as pltpu

SQ2 = math.sqrt(2.0)
_MIB = 1024 * 1024


def _round_up(x, m):
    return ((x + m - 1) // m) * m


def _committee_kernel(x_ref, w_ref, v_ref, h_ref, out_ref, *,
                      inv_sqN, inv_sqN_sq2, tn, n_valid):
    """One (batch-tile, N-tile) grid step."""
    k = pl.program_id(1)

    x = x_ref[...]
    w = w_ref[...]

    # Ragged reduction tail: only traced when TN does not divide N.
    # Zero both the invalid x columns and the invalid W rows so the partial
    # sum is exact and immune to NaN garbage in out-of-bounds reads.
    if n_valid is not None:
        col0 = k * tn
        col = col0 + lax.broadcasted_iota(jnp.int32, x.shape, 1)
        x = jnp.where(col < n_valid, x, 0)
        row = col0 + lax.broadcasted_iota(jnp.int32, w.shape, 0)
        w = jnp.where(row < n_valid, w, 0)

    # Raw partial sums of x @ W on the MXU (f32 accumulation).
    part = jnp.dot(x, w, preferred_element_type=jnp.float32)

    # h block index ignores k -> VMEM-resident across the reduction; use it
    # as the accumulator directly (overwrite on k==0, add afterwards).
    @pl.when(k == 0)
    def _init():
        h_ref[...] = part

    @pl.when(k != 0)
    def _accum():
        h_ref[...] += part

    @pl.when(k == pl.num_programs(1) - 1)
    def _finalize():
        raw = h_ref[...]
        # h = (x @ W) / sqrt(N): multiply by a precomputed reciprocal.
        h_ref[...] = (raw * inv_sqN).astype(h_ref.dtype)
        # g = erf(h / sqrt(2)) with both scales folded into one constant.
        g = lax.erf(raw * inv_sqN_sq2)
        # out = g @ v as VPU multiply + lane reduction.
        out_ref[...] = jnp.sum(g * v_ref[...], axis=-1,
                               keepdims=True).astype(out_ref.dtype)


def _vmem_limit_bytes():
    """Per-generation scoped-VMEM request (v5e/v6e: 96 MiB, v7x: 48 MiB)."""
    try:
        cap = pltpu.get_tpu_info().vmem_capacity_bytes
    except Exception:
        cap = 64 * _MIB          # conservative fallback
    return int(min(0.75 * cap, 96 * _MIB))


def _pick_tiles(B, N, K, elt, arr_budget):
    """Choose (TB, TN) so the double-buffered working set fits arr_budget."""
    # Batch tile: multiple of 8; >=2 tiles whenever B allows so both v7x
    # TensorCores get work; cap scales with the available VMEM budget.
    tb_cap = 1024 if arr_budget >= 64 * _MIB else 512
    if B <= 8:
        TB = 8
    else:
        TB = max(8, min(tb_cap, _round_up(-(-B // 2), 8)))

    def usage(tn):
        return (2 * TB * tn * elt          # x tile, double-buffered
                + 2 * tn * K * elt         # W tile, double-buffered
                + 2 * TB * K * 4           # h output / accumulator
                + 2 * TB * 128 * 4)        # out column (lane-padded)

    # Full residency: W DMA'd once, single reduction step.
    if usage(N) <= arr_budget:
        return TB, N

    # Otherwise: largest TN (multiple of 128) that fits; keep DMA row
    # segments large (never drop below 512 while searching for a divisor).
    tn_max = arr_budget - 2 * TB * K * 4 - 2 * TB * 128 * 4
    tn_max //= (2 * TB * elt + 2 * K * elt)
    tn_max = max(128, (tn_max // 128) * 128)
    tn_max = min(tn_max, _round_up(N, 128))

    tn = tn_max
    floor = max(512, tn_max // 4)
    while tn >= floor:
        if N % tn == 0:
            return TB, tn                  # exact divisor: no ragged tail
        tn -= 128
    return TB, tn_max                      # ragged tail masked in-kernel


def committee_forward(x, W, v, *, compute_dtype=jnp.bfloat16):
    """Committee forward pass. Returns (h [B, K] f32, out [B] f32)."""
    B, N = x.shape
    N_w, K = W.shape
    assert N_w == N

    inv_sqN = 1.0 / math.sqrt(N)
    inv_sqN_sq2 = inv_sqN / SQ2

    vmem_limit = _vmem_limit_bytes()
    arr_budget = max(16 * _MIB, vmem_limit - 8 * _MIB)   # compiler headroom
    elt = jnp.dtype(compute_dtype).itemsize
    TB, TN = _pick_tiles(B, N, K, elt, arr_budget)

    grid = (pl.cdiv(B, TB), pl.cdiv(N, TN))
    n_valid = N if (N % TN) != 0 else None

    xc = x.astype(compute_dtype)
    Wc = W.astype(compute_dtype)
    v_row = v.reshape(1, K).astype(jnp.float32)

    kernel = functools.partial(_committee_kernel,
                               inv_sqN=inv_sqN, inv_sqN_sq2=inv_sqN_sq2,
                               tn=TN, n_valid=n_valid)

    h, out2d = pl.pallas_call(
        kernel,
        out_shape=(
            jax.ShapeDtypeStruct((B, K), jnp.float32),
            jax.ShapeDtypeStruct((B, 1), jnp.float32),
        ),
        grid=grid,
        in_specs=[
            pl.BlockSpec((TB, TN), lambda i, k: (i, k)),   # x: stream batch & N
            pl.BlockSpec((TN, K), lambda i, k: (k, 0)),    # W: stream along N
            pl.BlockSpec((1, K), lambda i, k: (0, 0)),     # v: resident
        ],
        out_specs=(
            pl.BlockSpec((TB, K), lambda i, k: (i, 0)),    # h (accumulator)
            pl.BlockSpec((TB, 1), lambda i, k: (i, 0)),    # out (column)
        ),
        compiler_params=pltpu.CompilerParams(
            dimension_semantics=("parallel", "arbitrary"),
            vmem_limit_bytes=vmem_limit,
        ),
    )(xc, Wc, v_row)

    return h, out2d[:, 0]


if __name__ == "__main__":
    # Small shapes consistent with the module: N input features, K hidden units.
    B, N, K = 8, 32, 8

    key = jax.random.PRNGKey(0)
    kx, kw = jax.random.split(key)

    # Deterministic params (mirrors torch.randn for W, ones/sqrt(K) for v).
    x = jax.random.normal(kx, (B, N), dtype=jnp.float32)
    W = jax.random.normal(kw, (N, K), dtype=jnp.float32)
    v = jnp.ones((K,), dtype=jnp.float32) / math.sqrt(K)

    # Pure-JAX reference.
    h_ref = jnp.dot(x, W, precision=lax.Precision.HIGHEST) / math.sqrt(N)
    out_ref = lax.erf(h_ref / SQ2) @ v

    # f32 input path: tight check.
    h32, out32 = committee_forward(x, W, v, compute_dtype=jnp.float32)
    jax.block_until_ready((h32, out32))
    assert jnp.allclose(h32, h_ref, atol=2e-5, rtol=1e-4), "h mismatch (f32)"
    assert jnp.allclose(out32, out_ref, atol=2e-5, rtol=1e-4), "out mismatch (f32)"

    # Default bf16-fed path (f32 MXU accumulation): input-rounding tolerance.
    hbf, outbf = committee_forward(x, W, v)
    jax.block_until_ready((hbf, outbf))
    assert jnp.allclose(hbf, h_ref, atol=5e-2, rtol=5e-2), "h mismatch (bf16)"
    assert jnp.allclose(outbf, out_ref, atol=5e-2, rtol=5e-2), "out mismatch (bf16)"

    print("KERNEL_OK")
</pallas_src>

<mosaic_0001>
module attributes {stable_mosaic.version = 11 : i64} {
  func.func @_committee_kernel(%arg0: i32, %arg1: i32, %arg2: memref<8x32xf32, #tpu.memory_space<vmem>>, %arg3: memref<32x8xf32, #tpu.memory_space<vmem>>, %arg4: memref<1x8xf32, #tpu.memory_space<vmem>>, %arg5: memref<8x8xf32, #tpu.memory_space<vmem>>, %arg6: memref<8x1xf32, #tpu.memory_space<vmem>>) attributes {dimension_semantics = [#tpu.dimension_semantics<parallel>, #tpu.dimension_semantics<arbitrary>], iteration_bounds = array<i64: 1, 1>, scalar_prefetch = 0 : i64, scratch_operands = 0 : i64, tpu.core_type = #tpu.core_type<tc>, window_params = [{transform_indices = @transform_0, window_bounds = array<i64: 8, 32>}, {transform_indices = @transform_1, window_bounds = array<i64: 32, 8>}, {pipeline_mode = #tpu.pipeline_mode<synchronous>, transform_indices = @transform_2, window_bounds = array<i64: 1, 8>}, {transform_indices = @transform_3, window_bounds = array<i64: 8, 8>}, {transform_indices = @transform_4, window_bounds = array<i64: 8, 1>}]} {
    %c0 = arith.constant 0 : index
    %c0_0 = arith.constant 0 : index
    %0 = vector.load %arg2[%c0, %c0_0] : memref<8x32xf32, #tpu.memory_space<vmem>>, vector<8x32xf32>
    %c0_1 = arith.constant 0 : index
    %c0_2 = arith.constant 0 : index
    %1 = vector.load %arg3[%c0_1, %c0_2] : memref<32x8xf32, #tpu.memory_space<vmem>>, vector<32x8xf32>
    %cst = arith.constant dense<0.000000e+00> : vector<8x8xf32>
    %2 = tpu.matmul %0, %1, %cst {dimension_numbers = #tpu.dot_dimension_numbers<[1], [0], [0], [1], [0, 0, 1, 1], [], []>} : vector<8x32xf32>, vector<32x8xf32>, vector<8x8xf32> -> vector<8x8xf32>
    %c0_i32 = arith.constant 0 : i32
    %3 = arith.cmpi eq, %arg1, %c0_i32 : i32
    %4 = arith.extui %3 : i1 to i32
    %c0_i32_3 = arith.constant 0 : i32
    %5 = arith.cmpi ne, %4, %c0_i32_3 : i32
    scf.if %5 {
      %c0_8 = arith.constant 0 : index
      %c0_9 = arith.constant 0 : index
      %12 = vector.load %arg5[%c0_8, %c0_9] : memref<8x8xf32, #tpu.memory_space<vmem>>, vector<8x8xf32>
      tpu.vector_store %arg5[%c0_8, %c0_9], %2 {strides = array<i32>} : memref<8x8xf32, #tpu.memory_space<vmem>>, vector<8x8xf32>,
    } else {
    }
    %c0_i32_4 = arith.constant 0 : i32
    %6 = arith.cmpi ne, %arg1, %c0_i32_4 : i32
    %7 = arith.extui %6 : i1 to i32
    %c0_i32_5 = arith.constant 0 : i32
    %8 = arith.cmpi ne, %7, %c0_i32_5 : i32
    scf.if %8 {
      %c0_8 = arith.constant 0 : index
      %c0_9 = arith.constant 0 : index
      %12 = vector.load %arg5[%c0_8, %c0_9] : memref<8x8xf32, #tpu.memory_space<vmem>>, vector<8x8xf32>
      %13 = arith.addf %12, %2 : vector<8x8xf32>
      %c0_10 = arith.constant 0 : index
      %c0_11 = arith.constant 0 : index
      %14 = vector.load %arg5[%c0_10, %c0_11] : memref<8x8xf32, #tpu.memory_space<vmem>>, vector<8x8xf32>
      tpu.vector_store %arg5[%c0_10, %c0_11], %13 {strides = array<i32>} : memref<8x8xf32, #tpu.memory_space<vmem>>, vector<8x8xf32>,
    } else {
    }
    %c0_i32_6 = arith.constant 0 : i32
    %9 = arith.cmpi eq, %arg1, %c0_i32_6 : i32
    %10 = arith.extui %9 : i1 to i32
    %c0_i32_7 = arith.constant 0 : i32
    %11 = arith.cmpi ne, %10, %c0_i32_7 : i32
    scf.if %11 {
      %c0_8 = arith.constant 0 : index
      %c0_9 = arith.constant 0 : index
      %12 = vector.load %arg5[%c0_8, %c0_9] : memref<8x8xf32, #tpu.memory_space<vmem>>, vector<8x8xf32>
      %cst_10 = arith.constant 0.176776692 : f32
      %13 = vector.broadcast %cst_10 : f32 to vector<8x8xf32>
      %14 = arith.mulf %12, %13 : vector<8x8xf32>
      %c0_11 = arith.constant 0 : index
      %c0_12 = arith.constant 0 : index
      %15 = vector.load %arg5[%c0_11, %c0_12] : memref<8x8xf32, #tpu.memory_space<vmem>>, vector<8x8xf32>
      tpu.vector_store %arg5[%c0_11, %c0_12], %14 {strides = array<i32>} : memref<8x8xf32, #tpu.memory_space<vmem>>, vector<8x8xf32>,
      %cst_13 = arith.constant 1.250000e-01 : f32
      %16 = vector.broadcast %cst_13 : f32 to vector<8x8xf32>
      %17 = arith.mulf %12, %16 : vector<8x8xf32>
      %18 = math.erf %17 : vector<8x8xf32>
      %c0_14 = arith.constant 0 : index
      %c0_15 = arith.constant 0 : index
      %19 = vector.load %arg4[%c0_14, %c0_15] : memref<1x8xf32, #tpu.memory_space<vmem>>, vector<1x8xf32>
      %20 = vector.broadcast %19 : vector<1x8xf32> to vector<8x8xf32>
      %21 = arith.mulf %18, %20 : vector<8x8xf32>
      %cst_16 = arith.constant dense<0.000000e+00> : vector<8xf32>
      %22 = vector.multi_reduction <add>, %21, %cst_16 [1] : vector<8x8xf32> to vector<8xf32>
      %23 = vector.shape_cast %22 : vector<8xf32> to vector<8x1xf32>
      %c0_17 = arith.constant 0 : index
      %c0_18 = arith.constant 0 : index
      %24 = vector.load %arg6[%c0_17, %c0_18] : memref<8x1xf32, #tpu.memory_space<vmem>>, vector<8x1xf32>
      tpu.vector_store %arg6[%c0_17, %c0_18], %23 {strides = array<i32>} : memref<8x1xf32, #tpu.memory_space<vmem>>, vector<8x1xf32>,
    } else {
    }
    return
  }
  func.func @transform_0(%arg0: i32, %arg1: i32) -> (i32, i32) {
    %c0_i32 = arith.constant 0 : i32
    return %arg0, %arg1 : i32, i32
  }
  func.func @transform_1(%arg0: i32, %arg1: i32) -> (i32, i32) {
    %c0_i32 = arith.constant 0 : i32
    %c0_i32_0 = arith.constant 0 : i32
    return %arg1, %c0_i32 : i32, i32
  }
  func.func @transform_2(%arg0: i32, %arg1: i32) -> (i32, i32) {
    %c0_i32 = arith.constant 0 : i32
    %c0_i32_0 = arith.constant 0 : i32
    %c0_i32_1 = arith.constant 0 : i32
    return %c0_i32, %c0_i32_0 : i32, i32
  }
  func.func @transform_3(%arg0: i32, %arg1: i32) -> (i32, i32) {
    %c0_i32 = arith.constant 0 : i32
    %c0_i32_0 = arith.constant 0 : i32
    return %arg0, %c0_i32 : i32, i32
  }
  func.func @transform_4(%arg0: i32, %arg1: i32) -> (i32, i32) {
    %c0_i32 = arith.constant 0 : i32
    %c0_i32_0 = arith.constant 0 : i32
    return %arg0, %c0_i32 : i32, i32
  }
}

</mosaic_0001>

<llo_original>
// kernel: tpu_custom_call.1
$region0: #{tpu_custom_call.1}
  #allocation0 [shape = 'u32[]', space=smem, size = 0x4, offset = 0x4, fixed_abs, tag = 'smem constant byte address 0x4 - core index']
  #allocation1 [shape = 'u32[144,128]{1,0:T(1,128)}', space=vmem, size = 0x12000, scoped, tag = 'internal scratch']
  %s0 = inlined_call_operand.vmem [shape: f32[8,32], index: 0, kind: input, shape index: {}]
  %s1 = inlined_call_operand.vmem [shape: f32[32,8], index: 1, kind: input, shape index: {}]
  %s2 = inlined_call_operand.vmem [shape: f32[1,8], index: 2, kind: input, shape index: {}]
  %s3 = inlined_call_operand.hbm [shape: f32[8,8], index: 3, kind: output, shape index: {0}]
  %s4 = inlined_call_operand.vmem [shape: f32[8,1], index: 4, kind: output, shape index: {1}]
  %5 = xla_tuple %s3, %s4
  %s6 = sld [smem:[#allocation0]]
  $region42: #{tpu_custom_call.1} parent=0
    _
  %s8 = ssub.s32 1, %s6
  %s9 = scalar_select 0, %s8, %s6
  $region1: #{tpu_custom_call.1} parent=0
    #allocation2 [shape = 'u8[4096]{0}', space=vmem, size = 0x1000, scoped, tag = 'output window, operand 0, single buffered']
    #allocation3 [shape = 's32[1]{0}', space=sflag, size = 0x4, scoped, tag = 'scoped memory for tpu_custom_call.1']
    %10 = vsyncpa [#allocation3], 0
    // Predicated region
    $region2: #{tpu_custom_call.1} parent=1 // pred_check
      _
    $region3: #{tpu_custom_call.1} parent=1 // pred_check_branch
      %12 = sbr.rel (0) target = $region5
    $region4: #{tpu_custom_call.1} parent=1 // pred_region
      _
    $region5: #{tpu_custom_call.1} parent=1 // pred_fallthru
      _
    // Predicated region
    $region6: #{tpu_custom_call.1} parent=1 // pred_check
      _
    $region7: #{tpu_custom_call.1} parent=1 // pred_check_branch
      %14 = sbr.rel (0) target = $region9
    $region8: #{tpu_custom_call.1} parent=1 // pred_region
      _
    $region9: #{tpu_custom_call.1} parent=1 // pred_fallthru
      _
    // Predicated region
    $region10: #{tpu_custom_call.1} parent=1 // pred_check
      _
    $region11: #{tpu_custom_call.1} parent=1 // pred_check_branch
      %16 = sbr.rel (0) target = $region13
    $region12: #{tpu_custom_call.1} parent=1 // pred_region
      _
    $region13: #{tpu_custom_call.1} parent=1 // pred_fallthru
      _
    %v17 = vld [vmem:[%s0] sm:$0xff]
    %v18 = vld [vmem:[%s1] sm:$0xff]
    %v19 = vld [vmem:[%s1 + $0x8] sm:$0xff]
    %v20 = vld [vmem:[%s1 + $0x10] sm:$0xff]
    %v21 = vld [vmem:[%s1 + $0x18] sm:$0xff]
    %vm22 = vcmask 261120
    %v24 = vsel %vm22, %v17, 0
    %26 = vmatprep.subr.mxu0 0.0
    %27 = vmatpush1.msra.mxu0 %v18
    %28 = vmatprep.subr.mxu0 0.0
    %29 = vmatpush1.msra.mxu0 %v19
    %30 = vmatprep.subr.mxu0 0.0
    %31 = vmatpush1.msra.mxu0 %v20
    %32 = vmatprep.subr.mxu0 0.0
    %33 = vmatpush1.msra.mxu0 %v21
    %34 = vmatprep.subr.mxu0 0.0
    %35 = vmatpush1.msra.mxu0 0.0
    %36 = vmatprep.subr.mxu0 0.0
    %37 = vmatpush1.msra.mxu0 0.0
    %38 = vmatprep.subr.mxu0 0.0
    %39 = vmatpush1.msra.mxu0 0.0
    %40 = vmatprep.subr.mxu0 0.0
    %41 = vmatpush1.msra.mxu0 0.0
    %42 = vmatprep.subr.mxu0 0.0
    %43 = vmatpush1.msra.mxu0 0.0
    %44 = vmatprep.subr.mxu0 0.0
    %45 = vmatpush1.msra.mxu0 0.0
    %46 = vmatprep.subr.mxu0 0.0
    %47 = vmatpush1.msra.mxu0 0.0
    %48 = vmatprep.subr.mxu0 0.0
    %49 = vmatpush1.msra.mxu0 0.0
    %50 = vmatprep.subr.mxu0 0.0
    %51 = vmatpush1.msra.mxu0 0.0
    %52 = vmatprep.subr.mxu0 0.0
    %53 = vmatpush1.msra.mxu0 0.0
    %54 = vmatprep.subr.mxu0 0.0
    %55 = vmatpush1.msra.mxu0 0.0
    %56 = vmatprep.subr.mxu0 0.0
    %57 = vmatpush1.msra.mxu0 0.0
    %58 = vmatprep.subr.mxu0 0.0
    %59 = vmatpush1.msra.mxu0 0.0
    %60 = vmatprep.subr.mxu0 0.0
    %61 = vmatpush1.msra.mxu0 0.0
    %62 = vmatprep.subr.mxu0 0.0
    %63 = vmatpush1.msra.mxu0 0.0
    %64 = vmatprep.subr.mxu0 0.0
    %65 = vmatpush1.msra.mxu0 0.0
    %66 = vmatprep.subr.mxu0 0.0
    %67 = vmatpush1.msra.mxu0 0.0
    %68 = vmatprep.subr.mxu0 0.0
    %69 = vmatpush1.msra.mxu0 0.0
    %70 = vmatprep.subr.mxu0 0.0
    %71 = vmatpush1.msra.mxu0 0.0
    %72 = vmatprep.subr.mxu0 0.0
    %73 = vmatpush1.msra.mxu0 0.0
    %74 = vmatprep.subr.mxu0 0.0
    %75 = vmatpush1.msra.mxu0 0.0
    %76 = vmatprep.subr.mxu0 0.0
    %77 = vmatpush1.msra.mxu0 0.0
    %78 = vmatprep.subr.mxu0 0.0
    %79 = vmatpush1.msra.mxu0 0.0
    %80 = vmatprep.subr.mxu0 0.0
    %81 = vmatpush1.msra.mxu0 0.0
    %82 = vmatprep.subr.mxu0 0.0
    %83 = vmatpush1.msra.mxu0 0.0
    %84 = vmatprep.subr.mxu0 0.0
    %85 = vmatpush1.msra.mxu0 0.0
    %86 = vmatprep.subr.mxu0 0.0
    %87 = vmatpush1.msra.mxu0 0.0
    %88 = vmatprep.subr.mxu0 0.0
    %89 = vmatpush1.msra.mxu0 0.0
    %90 = vmatprep.mubr.f32.mxu0 0.0
    %91 = vmatmul.mubr.f32.gmra.mrb[0].mxu0 %v24
    %v92 = vpop.f32.mrb[0].mxu0
    %v93 = vadd.f32 0.0, %v92
    %v94 = vpop.f32.mrb[0].mxu0
    %95 = vdwg.mxu0
    %p96 = scmp.eq.s32.totalorder 0, 0
    // Predicated region
    $region14: #{tpu_custom_call.1} parent=1 // pred_check
      %p97 = pneg %p96
    $region15: #{tpu_custom_call.1} parent=1 // pred_check_branch
      %99 = sbr.rel (%p97) target = $region17
    $region16: #{tpu_custom_call.1} parent=1 // pred_region
      %vm100 = vcmask 64512
      %101 = vst.msk [vmem:[#allocation2] sm:$0xff] %vm100, %v93
    $region17: #{tpu_custom_call.1} parent=1 // pred_fallthru
      _
    %p102 = scmp.ne.s32.totalorder 0, 0
    // Predicated region
    $region18: #{tpu_custom_call.1} parent=1 // pred_check
      %p103 = pneg %p102
    $region19: #{tpu_custom_call.1} parent=1 // pred_check_branch
      %105 = sbr.rel (%p103) target = $region21
    $region20: #{tpu_custom_call.1} parent=1 // pred_region
      %v106 = vld [vmem:[#allocation2] sm:$0xff]
      %v107 = vadd.f32 %v106, %v93
      %vm108 = vcmask 64512
      %109 = vst.msk [vmem:[#allocation2] sm:$0xff] %vm108, %v107
    $region21: #{tpu_custom_call.1} parent=1 // pred_fallthru
      _
    // Predicated region
    $region22: #{tpu_custom_call.1} parent=1 // pred_check
      %p110 = pneg %p96
    $region23: #{tpu_custom_call.1} parent=1 // pred_check_branch
      %112 = sbr.rel (%p110) target = $region25
    $region24: #{tpu_custom_call.1} parent=1 // pred_region
      %v113 = vld [vmem:[#allocation2] sm:$0xff]
      %v114 = vmul.f32 %v113, 0.17677669
      %vm115 = vcmask 64512
      %116 = vst.msk [vmem:[#allocation2] sm:$0xff] %vm115, %v114
      %v117 = vmul.f32 %v113, 0.125
      %v118 = verf.f32.pop %v117
      %v119 = vld [vmem:[%s2] sm:$0x1]
      %v121 = vlaneseq
      %v122 = vshrl.u32 %v121, 7
      %v123 = vsub.s32 0, %v122
      %v124 = vrot.slane %v119, %v123
      %v126 = vmul.f32 %v118, %v124
      %v127 = vsel %vm115, %v126, 0.0
      %128 = vadd.xlane.f32.xlu0 %v127
      %v129 = vpop.xlane.xlu0 %128
      %vm130 = vcmask 7168
      %131 = vst.msk [vmem:[%s4] sm:$0xff] %vm130, %v129
    $region25: #{tpu_custom_call.1} parent=1 // pred_fallthru
      _
    // Predicated region
    $region26: #{tpu_custom_call.1} parent=1 // pred_check
      _
    $region27: #{tpu_custom_call.1} parent=1 // pred_check_branch
      %133 = sbr.rel (0) target = $region29
    $region28: #{tpu_custom_call.1} parent=1 // pred_region
      %s135 = ssub.s32 128, 128
      %136 = vsyncadd [#allocation3], %s135
      %s138 = sshll.u32 [#allocation2], 4
      %s139 = int_to_ptr.vmem [resolvable:$true] %s138
      %141 = dma.vmem_to_hbm [thread:$0]  %s139, 128, %s3, [#allocation3]
    $region29: #{tpu_custom_call.1} parent=1 // pred_fallthru
      _
    // Predicated region
    $region30: #{tpu_custom_call.1} parent=1 // pred_check
      _
    $region31: #{tpu_custom_call.1} parent=1 // pred_check_branch
      %143 = sbr.rel (0) target = $region33
    $region32: #{tpu_custom_call.1} parent=1 // pred_region
      _
    $region33: #{tpu_custom_call.1} parent=1 // pred_fallthru
      _
    // Predicated region
    $region34: #{tpu_custom_call.1} parent=1 // pred_check
      _
    $region35: #{tpu_custom_call.1} parent=1 // pred_check_branch
      %145 = sbr.rel (0) target = $region37
    $region36: #{tpu_custom_call.1} parent=1 // pred_region
      %146 = dma.done [#allocation3], 128
    $region37: #{tpu_custom_call.1} parent=1 // pred_fallthru
      _
    // Predicated region
    $region38: #{tpu_custom_call.1} parent=1 // pred_check
      _
    $region39: #{tpu_custom_call.1} parent=1 // pred_check_branch
      %148 = sbr.rel (0) target = $region41
    $region40: #{tpu_custom_call.1} parent=1 // pred_region
      _
    $region41: #{tpu_custom_call.1} parent=1 // pred_fallthru
      _
    %149 = vsyncpa [#allocation3], 1

</llo_original>
